<compile_context>
chip_gen: v5e
topology: v5e:2x2
jax: 0.10.0
libtpu: 0.0.40
codegen_flags: <defaults>
</compile_context>

<pallas_src>
import functools

import jax
import jax.numpy as jnp
from jax import lax
from jax.experimental import pallas as pl
from jax.experimental.pallas import tpu as pltpu


def _round_up(x, m):
    return ((x + m - 1) // m) * m


def _cdiv(a, b):
    return -(-a // b)


def _label_smoothing_kernel(x_ref, xt_ref, o_ref, m_scr, s_scr, sx_scr, *,
                            smoothing, num_classes, num_rows, row_tile,
                            class_tile, ragged_c):
    i = pl.program_id(0)          # row-tile index ("parallel")
    j = pl.program_id(1)          # class-chunk index ("arbitrary" / reduction)
    nj = pl.num_programs(1)

    @pl.when(j == 0)
    def _init():
        m_scr[...] = jnp.full_like(m_scr, -jnp.inf)
        s_scr[...] = jnp.zeros_like(s_scr)
        sx_scr[...] = jnp.zeros_like(sx_scr)

    x = x_ref[...]                                            # (RT, CT) native dtype
    if ragged_c:
        # Last class chunk is ragged: kill garbage columns so they contribute
        # exp(-inf)=0 to the softmax sum and 0 to sum_x.
        col = lax.broadcasted_iota(jnp.int32, x.shape, 1) + j * class_tile
        cmask = col < num_classes
        x = jnp.where(cmask, x, -jnp.inf)

    # Online softmax carry: running max, running exp-sum, running sum of logits.
    m_chunk = jnp.max(x, axis=-1, keepdims=True).astype(jnp.float32)   # (RT, 1)
    m_prev = m_scr[...]
    m_new = jnp.maximum(m_prev, m_chunk)

    xf = x.astype(jnp.float32)
    e = jnp.exp(xf - m_new)                                   # <= 1, no overflow
    s_scr[...] = jnp.exp(m_prev - m_new) * s_scr[...] + jnp.sum(
        e, axis=-1, keepdims=True)
    m_scr[...] = m_new
    if ragged_c:
        xf = jnp.where(cmask, xf, 0.0)
    sx_scr[...] = sx_scr[...] + jnp.sum(xf, axis=-1, keepdims=True)

    @pl.when(j == nj - 1)
    def _finalize():
        lse = m_scr[...] + jnp.log(s_scr[...])                # (RT, 1)
        off = jnp.float32(smoothing / max(num_classes - 1.0, 1.0))
        on = jnp.float32(1.0 - smoothing)
        c_f = jnp.float32(num_classes)
        x_t = xt_ref[...]                                     # (RT, 1) f32
        # sum_c(-w_c*(x_c - lse)) == -( off*(sum_x - C*lse) + (on-off)*(x_t - lse) )
        row_loss = -(off * (sx_scr[...] - c_f * lse) + (on - off) * (x_t - lse))
        # Select-based mask drops garbage rows of the ragged last row tile
        # (even NaN/Inf cannot leak through a select).
        row = lax.broadcasted_iota(jnp.int32, (row_tile, 1), 0) + i * row_tile
        o_ref[...] = jnp.where(row < num_rows, row_loss, 0.0)


def label_smoothing_loss(x, target, smoothing=0.0, *, row_tile=None,
                         class_tile=None):
    """x: (B, C) float (f32 or bf16), target: (B,) int. Returns scalar f32 loss."""
    B, C = x.shape
    num_rows = B
    itemsize = jnp.dtype(x.dtype).itemsize

    # Tiny-batch guard: blocks need >= 8 sublanes; pad rows only in this corner.
    if B < 8:
        x = jnp.pad(x, ((0, 8 - B), (0, 0)))
        target = jnp.pad(target, (0, 8 - B))
        B = 8

    # Generation-aware VMEM budget (v5e/v6e: 128 MiB physical, v7x: 64 MiB).
    try:
        vmem_cap = int(pltpu.get_tpu_info().vmem_capacity_bytes)
    except Exception:
        vmem_cap = 64 * 1024 * 1024
    vmem_limit = int(min((vmem_cap * 3) // 4, 96 * 1024 * 1024))
    # Live set per grid step ~= 2x double-buffered input block + ~2-3 block-sized
    # f32 temporaries (upcast, exp), so budget one block at ~limit/12.
    block_budget = max(512 * 1024, min(8 * 1024 * 1024, vmem_limit // 12))

    # Class (lane) tiling: full stripe when it fits with >= 8 rows, otherwise
    # 128-aligned chunks processed by the online-softmax grid axis.
    if class_tile is None:
        if 8 * C * itemsize <= block_budget:
            class_tile = C
        else:
            class_tile = max(128, min(2048,
                                      ((block_budget // (8 * itemsize)) // 128) * 128))
    class_tile = int(class_tile)
    if class_tile >= C or C <= 128:
        class_tile = C
    else:
        class_tile = max(128, (class_tile // 128) * 128)
    nc = _cdiv(C, class_tile)
    ragged_c = (C % class_tile) != 0

    # Row (sublane) tiling.
    if row_tile is None:
        rt = block_budget // max(class_tile * itemsize, 1)
        rt = max(8, min(1024, (rt // 8) * 8))
        if B >= 16:
            # Keep >= 2 row tiles so v7x's two TensorCores both get work.
            rt = min(rt, _round_up(_cdiv(B, 2), 8))
        row_tile = rt
    row_tile = max(8, (int(row_tile) // 8) * 8)
    nb = _cdiv(B, row_tile)

    # Hoist the target-logit gather out of the kernel (B scalars), deleting the
    # per-element iota/compare/select chain from the kernel's VALU path.
    # TODO(synk): if XLA's gather lowering ever re-reads all of x, fall back to
    # the in-kernel one-hot select (v5e/v6e are HBM-bound so it is free there).
    x_t = jnp.take_along_axis(x, target.astype(jnp.int32)[:, None], axis=-1)
    x_t = x_t.astype(jnp.float32)

    kernel = functools.partial(
        _label_smoothing_kernel,
        smoothing=float(smoothing),
        num_classes=C,
        num_rows=num_rows,
        row_tile=row_tile,
        class_tile=class_tile,
        ragged_c=ragged_c,
    )

    row_losses = pl.pallas_call(
        kernel,
        out_shape=jax.ShapeDtypeStruct((B, 1), jnp.float32),
        grid_spec=pltpu.PrefetchScalarGridSpec(
            num_scalar_prefetch=0,
            grid=(nb, nc),
            in_specs=[
                pl.BlockSpec((row_tile, class_tile), lambda i, j: (i, j)),
                pl.BlockSpec((row_tile, 1), lambda i, j: (i, 0)),
            ],
            # Each row tile owns its output block; only the class axis carries a
            # dependency (through the VMEM scratch accumulators).
            out_specs=pl.BlockSpec((row_tile, 1), lambda i, j: (i, 0)),
            scratch_shapes=[
                pltpu.VMEM((row_tile, 1), jnp.float32),   # running max
                pltpu.VMEM((row_tile, 1), jnp.float32),   # running exp-sum
                pltpu.VMEM((row_tile, 1), jnp.float32),   # running sum of logits
            ],
        ),
        compiler_params=pltpu.CompilerParams(
            dimension_semantics=("parallel", "arbitrary"),
            vmem_limit_bytes=vmem_limit,
        ),
    )(x, x_t)

    # Precise final reduction in XLA; divide by the true batch size.
    return jnp.sum(row_losses) / jnp.float32(num_rows)


def _reference(x, target, smoothing):
    # Pure-JAX reference mirroring the PyTorch module.
    log_prob = jax.nn.log_softmax(x.astype(jnp.float32), axis=-1)
    C = x.shape[-1]
    weight = jnp.full(x.shape, smoothing / (C - 1.0), dtype=jnp.float32)
    onehot = jax.nn.one_hot(target, C, dtype=jnp.float32)
    weight = weight * (1.0 - onehot) + onehot * (1.0 - smoothing)
    return jnp.mean(jnp.sum(-weight * log_prob, axis=-1))


if __name__ == "__main__":
    smoothing = 0.1
    keys = jax.random.split(jax.random.PRNGKey(0), 6)

    # Case 1: small lane-narrow classes, auto tiles (two row tiles, single chunk).
    x1 = jax.random.normal(keys[0], (16, 32), dtype=jnp.float32)
    t1 = jax.random.randint(keys[1], (16,), 0, 32, dtype=jnp.int32)
    loss1 = jax.block_until_ready(label_smoothing_loss(x1, t1, smoothing=smoothing))
    ref1 = _reference(x1, t1, smoothing)
    assert jnp.allclose(loss1, ref1, rtol=1e-4, atol=1e-5), (loss1, ref1)

    # Case 2: batch not a multiple of the tile -> ragged last row tile (no pad).
    x2 = jax.random.normal(keys[2], (50, 160), dtype=jnp.float32)
    t2 = jax.random.randint(keys[3], (50,), 0, 160, dtype=jnp.int32)
    loss2 = jax.block_until_ready(
        label_smoothing_loss(x2, t2, smoothing=smoothing, row_tile=16))
    ref2 = _reference(x2, t2, smoothing)
    assert jnp.allclose(loss2, ref2, rtol=1e-4, atol=1e-5), (loss2, ref2)

    # Case 3: class axis chunked (online softmax across 3 chunks, ragged last
    # chunk) plus a ragged last row tile.
    x3 = jax.random.normal(keys[4], (24, 300), dtype=jnp.float32)
    t3 = jax.random.randint(keys[5], (24,), 0, 300, dtype=jnp.int32)
    loss3 = jax.block_until_ready(
        label_smoothing_loss(x3, t3, smoothing=smoothing, class_tile=128))
    ref3 = _reference(x3, t3, smoothing)
    assert jnp.allclose(loss3, ref3, rtol=1e-4, atol=1e-5), (loss3, ref3)

    print("KERNEL_OK")
</pallas_src>

<mosaic_0001>
module attributes {stable_mosaic.version = 11 : i64} {
  func.func @_label_smoothing_kernel(%arg0: i32, %arg1: i32, %arg2: memref<8x32xf32, #tpu.memory_space<vmem>>, %arg3: memref<8x1xf32, #tpu.memory_space<vmem>>, %arg4: memref<8x1xf32, #tpu.memory_space<vmem>>, %arg5: memref<8x1xf32, #tpu.memory_space<vmem>>, %arg6: memref<8x1xf32, #tpu.memory_space<vmem>>, %arg7: memref<8x1xf32, #tpu.memory_space<vmem>>) attributes {dimension_semantics = [#tpu.dimension_semantics<parallel>, #tpu.dimension_semantics<arbitrary>], iteration_bounds = array<i64: 2, 1>, scalar_prefetch = 0 : i64, scratch_operands = 3 : i64, tpu.core_type = #tpu.core_type<tc>, window_params = [{transform_indices = @transform_0, window_bounds = array<i64: 8, 32>}, {transform_indices = @transform_1, window_bounds = array<i64: 8, 1>}, {transform_indices = @transform_2, window_bounds = array<i64: 8, 1>}]} {
    %c0_i32 = arith.constant 0 : i32
    %0 = arith.cmpi eq, %arg1, %c0_i32 : i32
    %1 = arith.extui %0 : i1 to i32
    %c0_i32_0 = arith.constant 0 : i32
    %2 = arith.cmpi ne, %1, %c0_i32_0 : i32
    scf.if %2 {
      %cst_18 = arith.constant 0xFF800000 : f32
      %28 = vector.broadcast %cst_18 : f32 to vector<8x1xf32>
      %c0_19 = arith.constant 0 : index
      %c0_20 = arith.constant 0 : index
      %29 = vector.load %arg5[%c0_19, %c0_20] : memref<8x1xf32, #tpu.memory_space<vmem>>, vector<8x1xf32>
      tpu.vector_store %arg5[%c0_19, %c0_20], %28 {strides = array<i32>} : memref<8x1xf32, #tpu.memory_space<vmem>>, vector<8x1xf32>,
      %cst_21 = arith.constant 0.000000e+00 : f32
      %30 = vector.broadcast %cst_21 : f32 to vector<8x1xf32>
      %c0_22 = arith.constant 0 : index
      %c0_23 = arith.constant 0 : index
      %31 = vector.load %arg6[%c0_22, %c0_23] : memref<8x1xf32, #tpu.memory_space<vmem>>, vector<8x1xf32>
      tpu.vector_store %arg6[%c0_22, %c0_23], %30 {strides = array<i32>} : memref<8x1xf32, #tpu.memory_space<vmem>>, vector<8x1xf32>,
      %cst_24 = arith.constant 0.000000e+00 : f32
      %32 = vector.broadcast %cst_24 : f32 to vector<8x1xf32>
      %c0_25 = arith.constant 0 : index
      %c0_26 = arith.constant 0 : index
      %33 = vector.load %arg7[%c0_25, %c0_26] : memref<8x1xf32, #tpu.memory_space<vmem>>, vector<8x1xf32>
      tpu.vector_store %arg7[%c0_25, %c0_26], %32 {strides = array<i32>} : memref<8x1xf32, #tpu.memory_space<vmem>>, vector<8x1xf32>,
    } else {
    }
    %c0 = arith.constant 0 : index
    %c0_1 = arith.constant 0 : index
    %3 = vector.load %arg2[%c0, %c0_1] : memref<8x32xf32, #tpu.memory_space<vmem>>, vector<8x32xf32>
    %cst = arith.constant dense<0xFF800000> : vector<8xf32>
    %4 = vector.multi_reduction <maximumf>, %3, %cst [1] : vector<8x32xf32> to vector<8xf32>
    %5 = vector.shape_cast %4 : vector<8xf32> to vector<8x1xf32>
    %c0_2 = arith.constant 0 : index
    %c0_3 = arith.constant 0 : index
    %6 = vector.load %arg5[%c0_2, %c0_3] : memref<8x1xf32, #tpu.memory_space<vmem>>, vector<8x1xf32>
    %7 = arith.maximumf %6, %5 : vector<8x1xf32>
    %8 = vector.broadcast %7 : vector<8x1xf32> to vector<8x32xf32>
    %9 = arith.subf %3, %8 : vector<8x32xf32>
    %10 = math.exp %9 : vector<8x32xf32>
    %11 = arith.subf %6, %7 : vector<8x1xf32>
    %12 = math.exp %11 : vector<8x1xf32>
    %c0_4 = arith.constant 0 : index
    %c0_5 = arith.constant 0 : index
    %13 = vector.load %arg6[%c0_4, %c0_5] : memref<8x1xf32, #tpu.memory_space<vmem>>, vector<8x1xf32>
    %14 = arith.mulf %12, %13 : vector<8x1xf32>
    %cst_6 = arith.constant dense<0.000000e+00> : vector<8xf32>
    %15 = vector.multi_reduction <add>, %10, %cst_6 [1] : vector<8x32xf32> to vector<8xf32>
    %16 = vector.shape_cast %15 : vector<8xf32> to vector<8x1xf32>
    %17 = arith.addf %14, %16 : vector<8x1xf32>
    %c0_7 = arith.constant 0 : index
    %c0_8 = arith.constant 0 : index
    %18 = vector.load %arg6[%c0_7, %c0_8] : memref<8x1xf32, #tpu.memory_space<vmem>>, vector<8x1xf32>
    tpu.vector_store %arg6[%c0_7, %c0_8], %17 {strides = array<i32>} : memref<8x1xf32, #tpu.memory_space<vmem>>, vector<8x1xf32>,
    %c0_9 = arith.constant 0 : index
    %c0_10 = arith.constant 0 : index
    %19 = vector.load %arg5[%c0_9, %c0_10] : memref<8x1xf32, #tpu.memory_space<vmem>>, vector<8x1xf32>
    tpu.vector_store %arg5[%c0_9, %c0_10], %7 {strides = array<i32>} : memref<8x1xf32, #tpu.memory_space<vmem>>, vector<8x1xf32>,
    %c0_11 = arith.constant 0 : index
    %c0_12 = arith.constant 0 : index
    %20 = vector.load %arg7[%c0_11, %c0_12] : memref<8x1xf32, #tpu.memory_space<vmem>>, vector<8x1xf32>
    %cst_13 = arith.constant dense<0.000000e+00> : vector<8xf32>
    %21 = vector.multi_reduction <add>, %3, %cst_13 [1] : vector<8x32xf32> to vector<8xf32>
    %22 = vector.shape_cast %21 : vector<8xf32> to vector<8x1xf32>
    %23 = arith.addf %20, %22 : vector<8x1xf32>
    %c0_14 = arith.constant 0 : index
    %c0_15 = arith.constant 0 : index
    %24 = vector.load %arg7[%c0_14, %c0_15] : memref<8x1xf32, #tpu.memory_space<vmem>>, vector<8x1xf32>
    tpu.vector_store %arg7[%c0_14, %c0_15], %23 {strides = array<i32>} : memref<8x1xf32, #tpu.memory_space<vmem>>, vector<8x1xf32>,
    %c0_i32_16 = arith.constant 0 : i32
    %25 = arith.cmpi eq, %arg1, %c0_i32_16 : i32
    %26 = arith.extui %25 : i1 to i32
    %c0_i32_17 = arith.constant 0 : i32
    %27 = arith.cmpi ne, %26, %c0_i32_17 : i32
    scf.if %27 {
      %c0_18 = arith.constant 0 : index
      %c0_19 = arith.constant 0 : index
      %28 = vector.load %arg5[%c0_18, %c0_19] : memref<8x1xf32, #tpu.memory_space<vmem>>, vector<8x1xf32>
      %c0_20 = arith.constant 0 : index
      %c0_21 = arith.constant 0 : index
      %29 = vector.load %arg6[%c0_20, %c0_21] : memref<8x1xf32, #tpu.memory_space<vmem>>, vector<8x1xf32>
      %30 = math.log %29 : vector<8x1xf32>
      %31 = arith.addf %28, %30 : vector<8x1xf32>
      %c0_22 = arith.constant 0 : index
      %c0_23 = arith.constant 0 : index
      %32 = vector.load %arg3[%c0_22, %c0_23] : memref<8x1xf32, #tpu.memory_space<vmem>>, vector<8x1xf32>
      %c0_24 = arith.constant 0 : index
      %c0_25 = arith.constant 0 : index
      %33 = vector.load %arg7[%c0_24, %c0_25] : memref<8x1xf32, #tpu.memory_space<vmem>>, vector<8x1xf32>
      %cst_26 = arith.constant 3.200000e+01 : f32
      %34 = vector.broadcast %cst_26 : f32 to vector<8x1xf32>
      %35 = arith.mulf %34, %31 : vector<8x1xf32>
      %36 = arith.subf %33, %35 : vector<8x1xf32>
      %cst_27 = arith.constant 0.0032258064 : f32
      %37 = vector.broadcast %cst_27 : f32 to vector<8x1xf32>
      %38 = arith.mulf %37, %36 : vector<8x1xf32>
      %cst_28 = arith.constant 0.899999976 : f32
      %cst_29 = arith.constant 0.0032258064 : f32
      %39 = arith.subf %cst_28, %cst_29 : f32
      %40 = arith.subf %32, %31 : vector<8x1xf32>
      %41 = vector.broadcast %39 : f32 to vector<8x1xf32>
      %42 = arith.mulf %41, %40 : vector<8x1xf32>
      %43 = arith.addf %38, %42 : vector<8x1xf32>
      %cst_30 = arith.constant 0.000000e+00 : f32
      %44 = vector.broadcast %cst_30 : f32 to vector<8x1xf32>
      %45 = arith.subf %44, %43 : vector<8x1xf32>
      %46 = tpu.iota {dimensions = array<i32: 0>} : vector<8x1xi32>
      %c8_i32 = arith.constant 8 : i32
      %47 = arith.muli %arg0, %c8_i32 : i32
      %48 = vector.broadcast %47 : i32 to vector<8x1xi32>
      %49 = arith.addi %46, %48 : vector<8x1xi32>
      %c16_i32 = arith.constant 16 : i32
      %50 = vector.broadcast %c16_i32 : i32 to vector<8x1xi32>
      %51 = arith.cmpi slt, %49, %50 : vector<8x1xi32>
      %cst_31 = arith.constant 0.000000e+00 : f32
      %52 = vector.broadcast %cst_31 : f32 to vector<8x1xf32>
      %53 = arith.select %51, %45, %52 : vector<8x1xi1>, vector<8x1xf32>
      %c0_32 = arith.constant 0 : index
      %c0_33 = arith.constant 0 : index
      %54 = vector.load %arg4[%c0_32, %c0_33] : memref<8x1xf32, #tpu.memory_space<vmem>>, vector<8x1xf32>
      tpu.vector_store %arg4[%c0_32, %c0_33], %53 {strides = array<i32>} : memref<8x1xf32, #tpu.memory_space<vmem>>, vector<8x1xf32>,
    } else {
    }
    return
  }
  func.func @transform_0(%arg0: i32, %arg1: i32) -> (i32, i32) {
    %c0_i32 = arith.constant 0 : i32
    return %arg0, %arg1 : i32, i32
  }
  func.func @transform_1(%arg0: i32, %arg1: i32) -> (i32, i32) {
    %c0_i32 = arith.constant 0 : i32
    %c0_i32_0 = arith.constant 0 : i32
    return %arg0, %c0_i32 : i32, i32
  }
  func.func @transform_2(%arg0: i32, %arg1: i32) -> (i32, i32) {
    %c0_i32 = arith.constant 0 : i32
    %c0_i32_0 = arith.constant 0 : i32
    return %arg0, %c0_i32 : i32, i32
  }
}

</mosaic_0001>

<llo_original>
// kernel: tpu_custom_call.1
$region0: #{tpu_custom_call.1}
  #allocation0 [shape = 'u32[]', space=smem, size = 0x4, offset = 0x4, fixed_abs, tag = 'smem constant byte address 0x4 - core index']
  #allocation1 [shape = 'u32[72,128]{1,0:T(1,128)}', space=vmem, size = 0x9000, scoped, tag = 'internal scratch']
  #allocation2 [shape = 'f32[8,1]{1,0:T(8,128)}', space=vmem, size = 0x1000, scoped, tag = 'scratch operand']
  #allocation3 [shape = 'f32[8,1]{1,0:T(8,128)}', space=vmem, size = 0x1000, scoped, tag = 'scratch operand']
  #allocation4 [shape = 'f32[8,1]{1,0:T(8,128)}', space=vmem, size = 0x1000, scoped, tag = 'scratch operand']
  %s0 = inlined_call_operand.vmem [shape: f32[16,32], index: 0, kind: input, shape index: {}]
  %s1 = inlined_call_operand.vmem [shape: f32[16,1], index: 1, kind: input, shape index: {}]
  %s2 = inlined_call_operand.vmem [shape: f32[16,1], index: 2, kind: output, shape index: {}]
  %s3 = sld [smem:[#allocation0]]
  $region49: #{tpu_custom_call.1} parent=0
    _
  %s5 = ssub.s32 1, %s3
  %s6 = scalar_select 0, %s5, %s3
  loop: start=0, step=1, limit=4
  $region2: #{tpu_custom_call.1} parent=0 // loop_pre_header
    _
  $region3: #{tpu_custom_call.1} parent=0 // loop_header
    %s8 = sphi 0, %s12
    %p9 = scmp.ge.s32.totalorder %s8, 4
    %s15 = sphi 0, %s27
    %s16 = sphi 0, %s23
    %s17 = sphi 0, %s15
    %s18 = sphi 0, %s16
    %s19 = sphi 0, %s17
    %s20 = sphi 0, %s18
    %s32 = sphi 0, %s34
    %s35 = sphi 0, %s32
    %s36 = sphi 0, %s35
    %s52 = sphi 0, %s36
    %s58 = sphi 0, %s60
    %s61 = sphi 0, %s58
    %s62 = sphi 0, %s61
    %s78 = sphi 0, %s62
    %s84 = sphi 0, %s86
    %s87 = sphi 0, %s84
    %s88 = sphi 0, %s87
    %s104 = sphi 0, %s88
  $region4: #{tpu_custom_call.1} parent=0 // loop_header_branch
    %11 = sbr.rel (%p9) target = $region8
  $region5: #{tpu_custom_call.1} parent=0 // loop_body
    %s13 = ssub.s32 %s8, 1
    %s14 = ssub.s32 %s8, 2
    %s21 = sadd.s32 1, %s16
    %p22 = scmp.ge.s32.totalorder %s21, 1
    %s23 = scalar_select %p22, 0, %s21
    %s24 = sadd.s32 1, %s15
    %s25 = scalar_select %p22, %s24, %s15
    %p26 = scmp.ge.s32.totalorder %s25, 2
    %s27 = scalar_select %p26, 0, %s25
    %s28 = ssub.s32 %s15, %s27
    %s29 = ssub.s32 %s16, %s23
    %s30 = sor.u32 %s28, %s29
    %p31 = scmp.eq.s32.totalorder %s30, 0
    %s33 = sadd.s32 %s32, 1
    %s34 = scalar_select %p31, %s32, %s33
    %p37 = pneg %p31
    %p38 = scmp.eq.s32.totalorder %s8, 1
    %p39 = por %p37, %p38
    %p40 = scmp.ne.s32.totalorder %s32, %s35
    %p41 = scmp.eq.s32.totalorder %s8, 0
    %p42 = por %p40, %p41
    %p43 = scmp.ne.s32.totalorder %s32, %s35
    %p44 = scmp.eq.s32.totalorder %s13, 1
    %p45 = por %p43, %p44
    %p46 = scmp.ne.s32.totalorder %s35, %s36
    %p47 = scmp.eq.s32.totalorder %s13, 0
    %p48 = por %p46, %p47
    %p49 = scmp.ne.s32.totalorder %s35, %s36
    %p50 = scmp.eq.s32.totalorder %s14, 1
    %p51 = por %p49, %p50
    %p53 = scmp.ne.s32.totalorder %s36, %s52
    %p54 = scmp.eq.s32.totalorder %s14, 0
    %p55 = por %p53, %p54
    %s56 = ssub.s32 %s15, %s27
    %p57 = scmp.eq.s32.totalorder %s56, 0
    %s59 = sadd.s32 %s58, 1
    %s60 = scalar_select %p57, %s58, %s59
    %p63 = pneg %p57
    %p64 = scmp.eq.s32.totalorder %s8, 1
    %p65 = por %p63, %p64
    %p66 = scmp.ne.s32.totalorder %s58, %s61
    %p67 = scmp.eq.s32.totalorder %s8, 0
    %p68 = por %p66, %p67
    %p69 = scmp.ne.s32.totalorder %s58, %s61
    %p70 = scmp.eq.s32.totalorder %s13, 1
    %p71 = por %p69, %p70
    %p72 = scmp.ne.s32.totalorder %s61, %s62
    %p73 = scmp.eq.s32.totalorder %s13, 0
    %p74 = por %p72, %p73
    %p75 = scmp.ne.s32.totalorder %s61, %s62
    %p76 = scmp.eq.s32.totalorder %s14, 1
    %p77 = por %p75, %p76
    %p79 = scmp.ne.s32.totalorder %s62, %s78
    %p80 = scmp.eq.s32.totalorder %s14, 0
    %p81 = por %p79, %p80
    %s82 = ssub.s32 %s15, %s27
    %p83 = scmp.eq.s32.totalorder %s82, 0
    %s85 = sadd.s32 %s84, 1
    %s86 = scalar_select %p83, %s84, %s85
    %p89 = pneg %p83
    %p90 = scmp.eq.s32.totalorder %s8, 1
    %p91 = por %p89, %p90
    %p92 = scmp.ne.s32.totalorder %s84, %s87
    %p93 = scmp.eq.s32.totalorder %s8, 0
    %p94 = por %p92, %p93
    %p95 = scmp.ne.s32.totalorder %s84, %s87
    %p96 = scmp.eq.s32.totalorder %s13, 1
    %p97 = por %p95, %p96
    %p98 = scmp.ne.s32.totalorder %s87, %s88
    %p99 = scmp.eq.s32.totalorder %s13, 0
    %p100 = por %p98, %p99
    %p101 = scmp.ne.s32.totalorder %s87, %s88
    %p102 = scmp.eq.s32.totalorder %s14, 1
    %p103 = por %p101, %p102
    %p105 = scmp.ne.s32.totalorder %s88, %s104
    %p106 = scmp.eq.s32.totalorder %s14, 0
    %p107 = por %p105, %p106
    %p108 = scmp.le.s32.totalorder 1, %s8
    %p109 = scmp.lt.s32.totalorder %s8, 3
    %p110 = pnand %p108, %p109
    %p111 = pneg %p110
    // Predicated region
    $region9: #{tpu_custom_call.1} parent=5 // pred_check
      _
    $region10: #{tpu_custom_call.1} parent=5 // pred_check_branch
      %113 = sbr.rel (%p110) target = $region12
    $region11: #{tpu_custom_call.1} parent=5 // pred_region
      %s114 = ssub.s32 %s8, 1
    $region12: #{tpu_custom_call.1} parent=5 // pred_fallthru
      _
    %p115 = scmp.lt.s32.totalorder %s8, 2
    // Predicated region
    $region13: #{tpu_custom_call.1} parent=5 // pred_check
      %p116 = pneg %p115
    $region14: #{tpu_custom_call.1} parent=5 // pred_check_branch
      %118 = sbr.rel (%p116) target = $region16
    $region15: #{tpu_custom_call.1} parent=5 // pred_region
      // Predicated region
      $region17: #{tpu_custom_call.1} parent=15 // pred_check
        %p119 = pneg %p42
      $region18: #{tpu_custom_call.1} parent=15 // pred_check_branch
        %121 = sbr.rel (%p119) target = $region20
      $region19: #{tpu_custom_call.1} parent=15 // pred_region
        %p122 = scmp.lt.s32.totalorder %s15, 1
        %s123 = scalar_select %p122, %s15, 1
        %p124 = scmp.lt.s32.totalorder %s16, 0
        %s125 = scalar_select %p124, %s16, 0
        %s126 = sadd.s32 %s125, %s123
        %s127 = smul.addr %s126, 8
        %s128 = scalar_lea.vmem %s0, %s127
      $region20: #{tpu_custom_call.1} parent=15 // pred_fallthru
        _
      // Predicated region
      $region21: #{tpu_custom_call.1} parent=15 // pred_check
        %p129 = pneg %p68
      $region22: #{tpu_custom_call.1} parent=15 // pred_check_branch
        %131 = sbr.rel (%p129) target = $region24
      $region23: #{tpu_custom_call.1} parent=15 // pred_region
        %p132 = scmp.lt.s32.totalorder %s15, 1
        %s133 = scalar_select %p132, %s15, 1
        %s134 = smul.addr %s133, 8
        %s135 = scalar_lea.vmem %s1, %s134
      $region24: #{tpu_custom_call.1} parent=15 // pred_fallthru
        _
    $region16: #{tpu_custom_call.1} parent=5 // pred_fallthru
      _
    %p136 = scmp.le.s32.totalorder 1, %s8
    %p137 = scmp.lt.s32.totalorder %s8, 3
    %p138 = pnand %p136, %p137
    %p139 = pneg %p138
    // Predicated region
    $region25: #{tpu_custom_call.1} parent=5 // pred_check
      _
    $region26: #{tpu_custom_call.1} parent=5 // pred_check_branch
      %141 = sbr.rel (%p138) target = $region28
    $region27: #{tpu_custom_call.1} parent=5 // pred_region
      %s142 = ssub.s32 %s8, 1
      %p143 = scmp.lt.s32.totalorder %s17, 1
      %s144 = scalar_select %p143, %s17, 1
      %p145 = scmp.lt.s32.totalorder %s18, 0
      %s146 = scalar_select %p145, %s18, 0
      %s147 = sadd.s32 %s146, %s144
      %s148 = smul.addr %s147, 8
      %s149 = scalar_lea.vmem %s0, %s148
      %p150 = pneg %p48
      %p151 = pneg %p45
      %p152 = scmp.lt.s32.totalorder %s17, 1
      %s153 = scalar_select %p152, %s17, 1
      %s154 = smul.addr %s153, 8
      %s155 = scalar_lea.vmem %s1, %s154
      %p156 = pneg %p74
      %p157 = pneg %p71
      %p158 = pneg %p100
      %p159 = pneg %p97
      %p160 = scmp.lt.s32.totalorder %s17, 1
      %s161 = scalar_select %p160, %s17, 1
      %s162 = smul.addr %s161, 8
      %s163 = scalar_lea.vmem %s2, %s162
      %p164 = scmp.lt.s32.totalorder %s17, 1
      %s165 = scalar_select %p164, %s17, 1
      %p166 = scmp.lt.s32.totalorder %s18, 0
      %s167 = scalar_select %p166, %s18, 0
      %s168 = sadd.s32 %s167, %s165
      %s169 = smul.addr %s168, 8
      %s170 = scalar_lea.vmem %s0, %s169
      %p171 = scmp.lt.s32.totalorder %s17, 1
      %s172 = scalar_select %p171, %s17, 1
      %s173 = smul.addr %s172, 8
      %s174 = scalar_lea.vmem %s1, %s173
      %p175 = scmp.lt.s32.totalorder %s17, 1
      %s176 = scalar_select %p175, %s17, 1
      %s177 = smul.addr %s176, 8
      %s178 = scalar_lea.vmem %s2, %s177
      %p179 = scmp.eq.s32.totalorder %s18, 0
      // Predicated region
      $region29: #{tpu_custom_call.1} parent=27 // pred_check
        %p180 = pneg %p179
      $region30: #{tpu_custom_call.1} parent=27 // pred_check_branch
        %182 = sbr.rel (%p180) target = $region32
      $region31: #{tpu_custom_call.1} parent=27 // pred_region
        %vm183 = vcmask 7168
        %184 = vst.msk [vmem:[#allocation2] sm:$0xff] %vm183, -inf
        %185 = vst.msk [vmem:[#allocation3] sm:$0xff] %vm183, 0.0
        %186 = vst.msk [vmem:[#allocation4] sm:$0xff] %vm183, 0.0
      $region32: #{tpu_custom_call.1} parent=27 // pred_fallthru
        _
      %v187 = vld [vmem:[%s170] sm:$0xff]
      %vm188 = vcmask 261120
      %v189 = vsel %vm188, %v187, -inf
      %190 = vmax.xlane.f32.xlu0 %v189
      %v191 = vpop.xlane.xlu0 %190
      %v192 = vld [vmem:[#allocation2] sm:$0xff]
      %v193 = vmax.f32 %v192, %v191
      %195 = vset.pattern.permute.xlu0 0
      %196 = vperm.xlu0 %195, %v193
      %v197 = vpop.permute.xlu0 %196
      %v199 = vsub.f32 %v187, %v197
      %v200 = vmul.f32 %v199, 1.442695
      %v201 = vpow.pop %v200
      %v202 = vsub.f32 %v192, %v193
      %v203 = vmul.f32 %v202, 1.442695
      %v204 = vpow.pop %v203
      %v205 = vld [vmem:[#allocation3] sm:$0xff]
      %v206 = vmul.f32 %v204, %v205
      %v207 = vsel %vm188, %v201, 0.0
      %208 = vadd.xlane.f32.xlu0 %v207
      %v209 = vpop.xlane.xlu0 %208
      %v210 = vadd.f32 %v206, %v209
      %vm211 = vcmask 7168
      %212 = vst.msk [vmem:[#allocation3] sm:$0xff] %vm211, %v210
      %213 = vst.msk [vmem:[#allocation2] sm:$0xff] %vm211, %v193
      %v214 = vld [vmem:[#allocation4] sm:$0xff]
      %v215 = vsel %vm188, %v187, 0.0
      %216 = vadd.xlane.f32.xlu0 %v215
      %v217 = vpop.xlane.xlu0 %216
      %v218 = vadd.f32 %v214, %v217
      %219 = vst.msk [vmem:[#allocation4] sm:$0xff] %vm211, %v218
      // Predicated region
      $region33: #{tpu_custom_call.1} parent=27 // pred_check
        %p220 = pneg %p179
      $region34: #{tpu_custom_call.1} parent=27 // pred_check_branch
        %222 = sbr.rel (%p220) target = $region36
      $region35: #{tpu_custom_call.1} parent=27 // pred_region
        %v223 = vld [vmem:[#allocation2] sm:$0xff]
        %v224 = vld [vmem:[#allocation3] sm:$0xff]
        %v225 = vlog2.pop %v224
        %v226 = vmul.f32 %v225, 0.6931472
        %v227 = vadd.f32 %v223, %v226
        %v228 = vld [vmem:[%s174] sm:$0xff]
        %v229 = vld [vmem:[#allocation4] sm:$0xff]
        %v230 = vmul.f32 %v227, 32.0
        %v231 = vsub.f32 %v229, %v230
        %v232 = vmul.f32 %v231, 0.0032258064
        %v233 = vsub.f32 %v228, %v227
        %v234 = vmul.f32 %v233, 0.8967742
        %v235 = vadd.f32 %v232, %v234
        %v236 = vsub.f32 0.0, %v235
        %v237 = vlaneseq
        %v238 = vshrl.u32 %v237, 7
        %s239 = smul.u32 %s17, 8
        %v240 = vstv %s239
        %v241 = vadd.s32 %v238, %v240
        %vm242 = vcmp.lt.s32.totalorder %v241, 16
        %v243 = vsel %vm242, %v236, 0.0
        %244 = vst.msk [vmem:[%s178] sm:$0xff] %vm211, %v243
      $region36: #{tpu_custom_call.1} parent=27 // pred_fallthru
        _
      %p245 = scmp.lt.s32.totalorder %s17, 1
      %s246 = scalar_select %p245, %s17, 1
      %s247 = smul.addr %s246, 8
      %s248 = scalar_lea.vmem %s2, %s247
      // Predicated region
      $region37: #{tpu_custom_call.1} parent=27 // pred_check
        %p249 = pneg %p97
      $region38: #{tpu_custom_call.1} parent=27 // pred_check_branch
        %251 = sbr.rel (%p249) target = $region40
      $region39: #{tpu_custom_call.1} parent=27 // pred_region
        _
      $region40: #{tpu_custom_call.1} parent=27 // pred_fallthru
        _
    $region28: #{tpu_custom_call.1} parent=5 // pred_fallthru
      _
    %p252 = scmp.le.s32.totalorder 2, %s8
    // Predicated region
    $region41: #{tpu_custom_call.1} parent=5 // pred_check
      %p253 = pneg %p252
    $region42: #{tpu_custom_call.1} parent=5 // pred_check_branch
      %255 = sbr.rel (%p253) target = $region44
    $region43: #{tpu_custom_call.1} parent=5 // pred_region
      %s256 = ssub.s32 %s8, 2
      // Predicated region
      $region45: #{tpu_custom_call.1} parent=43 // pred_check
        %p257 = pneg %p103
      $region46: #{tpu_custom_call.1} parent=43 // pred_check_branch
        %259 = sbr.rel (%p257) target = $region48
      $region47: #{tpu_custom_call.1} parent=43 // pred_region
        %p260 = scmp.lt.s32.totalorder %s19, 1
        %s261 = scalar_select %p260, %s19, 1
        %s262 = smul.addr %s261, 8
        %s263 = scalar_lea.vmem %s2, %s262
      $region48: #{tpu_custom_call.1} parent=43 // pred_fallthru
        _
    $region44: #{tpu_custom_call.1} parent=5 // pred_fallthru
      _
  $region6: #{tpu_custom_call.1} parent=0 // loop_footer
    %s12 = sadd.s32 1, %s8
  $region7: #{tpu_custom_call.1} parent=0 // loop_footer_branch
    %7 = sbr.rel target = $region3
  $region8: #{tpu_custom_call.1} parent=0 // loop_exit
    _

</llo_original>
